<compile_context>
chip_gen: v6e
topology: v6e:2x2x1
jax: 0.10.0
libtpu: 0.0.40
codegen_flags: <defaults>
</compile_context>

<pallas_src>
import inspect
import math

import jax
import jax.numpy as jnp
from jax.experimental import pallas as pl
from jax.experimental.pallas import tpu as pltpu

_LANE = 128  # TPU lane width (last-dim tiling unit)


def _round_up(x, m):
    return ((x + m - 1) // m) * m


def _cdiv(a, b):
    return (a + b - 1) // b


def _pad_to(a, shape):
    pads = [(0, t - s) for s, t in zip(a.shape, shape)]
    if all(p == (0, 0) for p in pads):
        return a
    return jnp.pad(a, pads)


def _row_align(dtype):
    """Minimum second-to-last tile dim for this dtype (sublane packing)."""
    bits = jnp.dtype(dtype).itemsize * 8
    if bits >= 32:
        return 8
    if bits == 16:
        return 16
    return 32


def _pipeline_mode_supported():
    """Explicit feature detection for BlockSpec(pipeline_mode=pl.Buffered(k))."""
    if not hasattr(pl, "Buffered"):
        return False
    try:
        params = inspect.signature(pl.BlockSpec).parameters
    except (TypeError, ValueError):
        return False
    return "pipeline_mode" in params


_HAS_PIPELINE_MODE = _pipeline_mode_supported()


def _vmem_capacity_bytes():
    """Per-TensorCore VMEM capacity; conservative fallback if unavailable."""
    try:
        info = pltpu.get_tpu_info()
        cap = int(getattr(info, "vmem_capacity_bytes", 0) or 0)
        if cap > 0:
            return cap
    except Exception:  # hardware probe only; never masks kernel errors
        pass
    return 64 * 1024 * 1024  # v7x-sized conservative default


# --------------------------------------------------------------------------
# Kernels
# --------------------------------------------------------------------------

def _mlp_fused_kernel(x_ref, w1_ref, b1_ref, w2_ref, b2_ref, o_ref):
    # Hidden layer: x @ W1 on the MXU, f32 accumulate; bias + ReLU on the VPU.
    h = jnp.dot(x_ref[...], w1_ref[...], preferred_element_type=jnp.float32)
    h = jnp.maximum(h + b1_ref[...].astype(jnp.float32), 0.0)
    # Output layer (cast h back to the weight dtype: no-op for f32 weights,
    # enables bf16 MXU when compute_dtype=bf16 was requested).
    y = jnp.dot(h.astype(w2_ref.dtype), w2_ref[...],
                preferred_element_type=jnp.float32)
    o_ref[...] = (y + b2_ref[...].astype(jnp.float32)).astype(o_ref.dtype)


def _mlp_ktiled_kernel(x_ref, w1_ref, b1_ref, w2_ref, b2_ref, o_ref, hacc_ref):
    # Feature (K) dimension tiled: accumulate the hidden pre-activation in an
    # f32 VMEM scratch; apply bias/ReLU and the second matmul on the last k.
    k = pl.program_id(1)

    @pl.when(k == 0)
    def _():
        hacc_ref[...] = jnp.zeros_like(hacc_ref)

    hacc_ref[...] += jnp.dot(x_ref[...], w1_ref[...],
                             preferred_element_type=jnp.float32)

    @pl.when(k == pl.num_programs(1) - 1)
    def _():
        h = jnp.maximum(hacc_ref[...] + b1_ref[...].astype(jnp.float32), 0.0)
        y = jnp.dot(h.astype(w2_ref.dtype), w2_ref[...],
                    preferred_element_type=jnp.float32)
        o_ref[...] = (y + b2_ref[...].astype(jnp.float32)).astype(o_ref.dtype)


# --------------------------------------------------------------------------
# Wrapper
# --------------------------------------------------------------------------

def _const_spec(shape, grid_rank, single_buffer):
    """BlockSpec for an operand whose block never changes across the grid.
    Single-buffered when the runtime supports pipeline_mode (halves the
    weights' VMEM footprint; matters most on v7x's 64 MiB VMEM)."""
    if grid_rank == 1:
        index_map = lambda i: (0, 0)
    else:
        index_map = lambda i, k: (0, 0)
    if single_buffer and _HAS_PIPELINE_MODE:
        return pl.BlockSpec(shape, index_map, pipeline_mode=pl.Buffered(1))
    return pl.BlockSpec(shape, index_map)


def _vmem_bytes_estimate(block_rows, f_dim, h_pad, o_pad, x_bytes, w_bytes,
                         out_bytes, ktiled, block_k):
    """Rough per-kernel VMEM footprint (buffers + f32 hidden)."""
    wbuf = 1 if _HAS_PIPELINE_MODE else 2          # resident-weight buffering
    small = (h_pad + o_pad + h_pad * o_pad) * w_bytes * wbuf   # b1, b2, W2
    if ktiled:
        w1 = 2 * block_k * h_pad * w_bytes          # double-buffered W1 slabs
        x_t = 2 * block_rows * block_k * x_bytes
    else:
        w1 = f_dim * h_pad * w_bytes * wbuf         # whole W1 resident
        x_t = 2 * block_rows * f_dim * x_bytes
    hidden = block_rows * h_pad * 4                 # f32 hidden / scratch
    out_t = 2 * block_rows * o_pad * out_bytes
    return small + w1 + x_t + hidden + out_t


def classifier_forward(x, w1, b1, w2, b2, *, block_rows=None, block_k=None,
                       compute_dtype=None, out_dtype=None):
    """MLP forward: ReLU(x @ w1 + b1) @ w2 + b2 via a fused Pallas TPU kernel.

    x: (n, F); w1: (F, H); b1: (H,); w2: (H, O); b2: (O,).
    compute_dtype (e.g. jnp.bfloat16) optionally narrows x/W storage for HBM
    bandwidth; both matmuls always accumulate in f32 and biases stay f32.
    block_k forces the K-tiled (feature-dim grid) path; otherwise it is
    enabled automatically when the resident weights would not fit VMEM.
    """
    n, f = x.shape
    f1, h = w1.shape
    h2, o = w2.shape
    assert f == f1 and h == h2, "weight shapes do not match input"
    out_dtype = jnp.dtype(out_dtype) if out_dtype is not None else jnp.dtype(x.dtype)

    if compute_dtype is not None:
        compute_dtype = jnp.dtype(compute_dtype)
        x = x.astype(compute_dtype)
        w1 = w1.astype(compute_dtype)
        w2 = w2.astype(compute_dtype)

    b1 = jnp.reshape(b1, (1, h)).astype(jnp.float32)
    b2 = jnp.reshape(b2, (1, o)).astype(jnp.float32)

    x_bytes = jnp.dtype(x.dtype).itemsize
    w_bytes = jnp.dtype(w1.dtype).itemsize
    o_bytes = out_dtype.itemsize

    # Lane-dense padding of hidden / output dims -> full-width MXU tiles and
    # unmasked output stores. Zero-padded W1 cols / b1 entries stay zero
    # through ReLU and meet zero W2 rows; padded output cols are sliced off.
    h_pad = _round_up(h, _LANE)
    o_pad = _round_up(o, _LANE)
    row_align = max(_row_align(x.dtype), _row_align(out_dtype))

    # Generation-aware VMEM budget: ~48 MiB on 64 MiB-VMEM chips (v7x),
    # ~96 MiB on 128 MiB chips (v5e/v6e).
    cap = _vmem_capacity_bytes()
    gen_cap = max(16 * 2 ** 20, min(100 * 2 ** 20, int(0.75 * cap)))

    # Decide whether the feature (K) dimension must be tiled (whole-W1-resident
    # fused path would blow the budget even at the smallest row tile).
    use_ktiled = block_k is not None
    if not use_ktiled:
        fused_min = _vmem_bytes_estimate(row_align, f, h_pad, o_pad, x_bytes,
                                         w_bytes, o_bytes, False, 0)
        use_ktiled = fused_min > gen_cap
    if use_ktiled:
        bk = block_k if block_k is not None else 512
        bk = max(_LANE, _round_up(min(int(bk), _round_up(f, _LANE)), _LANE))
        block_k = bk
        f_pad = _round_up(f, block_k)   # zero cols of x / rows of W1 cancel
    else:
        block_k = 0
        f_pad = f

    # Row tile: big by default (per-grid-step overhead ~0.35us dominates tiny
    # tiles), clamped to the batch, optionally split for v7x's two TCs, and
    # shrunk until the VMEM estimate fits the per-generation budget.
    auto_rows = block_rows is None
    block_rows = 1024 if auto_rows else int(block_rows)
    block_rows = max(row_align, _round_up(block_rows, row_align))
    block_rows = min(block_rows, _round_up(n, row_align))
    if auto_rows and n >= 2 * _LANE:
        block_rows = min(block_rows, _round_up(_cdiv(n, 2), row_align))
    min_rows = max(row_align, 128)
    while (block_rows > min_rows
           and _vmem_bytes_estimate(block_rows, f_pad, h_pad, o_pad, x_bytes,
                                    w_bytes, o_bytes, use_ktiled, block_k)
               > gen_cap):
        block_rows = max(row_align, _round_up(block_rows // 2, row_align))

    # Batch handling without a wrapper-side copy of x:
    #  * block_rows <= n: grid = cdiv(n, block_rows); Pallas handles the
    #    partial tail block (each output row depends only on its own x row,
    #    rows past n are never written back to HBM).
    #  * block_rows > n (tiny batches only): pad by < row_align rows.
    n_rows = block_rows if block_rows > n else n
    grid_rows = _cdiv(n_rows, block_rows)

    x_p = _pad_to(x, (n_rows, f_pad))
    w1_p = _pad_to(w1, (f_pad, h_pad))
    b1_p = _pad_to(b1, (1, h_pad))
    w2_p = _pad_to(w2, (h_pad, o_pad))
    b2_p = _pad_to(b2, (1, o_pad))

    est = _vmem_bytes_estimate(block_rows, f_pad, h_pad, o_pad, x_bytes,
                               w_bytes, o_bytes, use_ktiled, block_k)
    vmem_limit = int(min(gen_cap, max(32 * 2 ** 20, est + 4 * 2 ** 20)))

    if use_ktiled:
        grid = (grid_rows, f_pad // block_k)
        in_specs = [
            pl.BlockSpec((block_rows, block_k), lambda i, k: (i, k)),   # x
            pl.BlockSpec((block_k, h_pad), lambda i, k: (k, 0)),        # W1 (streams over K)
            _const_spec((1, h_pad), 2, True),                           # b1
            _const_spec((h_pad, o_pad), 2, True),                       # W2
            _const_spec((1, o_pad), 2, True),                           # b2
        ]
        out_spec = pl.BlockSpec((block_rows, o_pad), lambda i, k: (i, 0))
        kernel = _mlp_ktiled_kernel
        scratch = [pltpu.VMEM((block_rows, h_pad), jnp.float32)]
        semantics = ("parallel", "arbitrary")
    else:
        grid = (grid_rows,)
        in_specs = [
            pl.BlockSpec((block_rows, f_pad), lambda i: (i, 0)),        # x
            _const_spec((f_pad, h_pad), 1, True),                       # W1
            _const_spec((1, h_pad), 1, True),                           # b1
            _const_spec((h_pad, o_pad), 1, True),                       # W2
            _const_spec((1, o_pad), 1, True),                           # b2
        ]
        out_spec = pl.BlockSpec((block_rows, o_pad), lambda i: (i, 0))
        kernel = _mlp_fused_kernel
        scratch = []
        semantics = ("parallel",)

    y_p = pl.pallas_call(
        kernel,
        out_shape=jax.ShapeDtypeStruct((n_rows, o_pad), out_dtype),
        grid_spec=pltpu.PrefetchScalarGridSpec(
            num_scalar_prefetch=0,
            grid=grid,
            in_specs=in_specs,
            out_specs=out_spec,
            scratch_shapes=scratch,
        ),
        compiler_params=pltpu.CompilerParams(
            dimension_semantics=semantics,
            vmem_limit_bytes=vmem_limit,
        ),
    )(x_p, w1_p, b1_p, w2_p, b2_p)

    # TODO(synk): callers that can consume the lane-padded output directly
    # could skip this slice copy and defer it.
    return y_p[:n, :o]


def init_linear_params(key, in_features, out_features, dtype=jnp.float32):
    """Deterministic init mimicking torch.nn.Linear default
    (uniform +/- 1/sqrt(fan_in)); weight stored as (in_features, out_features)."""
    kw, kb = jax.random.split(key)
    bound = 1.0 / math.sqrt(in_features)
    w = jax.random.uniform(kw, (in_features, out_features), dtype,
                           minval=-bound, maxval=bound)
    b = jax.random.uniform(kb, (out_features,), dtype,
                           minval=-bound, maxval=bound)
    return w, b


if __name__ == "__main__":
    # Shapes implied by the module: num_feats = layer_2_feats * 2,
    # hidden = cls_feats, out_features = 5.
    batch = 8
    layer_2_feats = 16
    num_feats = layer_2_feats * 2      # 32
    cls_feats = 64
    out_features = 5

    key = jax.random.PRNGKey(0)
    kx, k1, k2, kx2, k3, kx3 = jax.random.split(key, 6)

    x = jax.random.normal(kx, (batch, num_feats), jnp.float32)
    w1, b1 = init_linear_params(k1, num_feats, cls_feats)
    w2, b2 = init_linear_params(k2, cls_feats, out_features)

    def reference(xx, ww1, bb1, ww2, bb2):
        return jnp.maximum(xx @ ww1 + bb1, 0.0) @ ww2 + bb2

    # 1) Small batch: single row tile, fused path.
    y = jax.block_until_ready(classifier_forward(x, w1, b1, w2, b2))
    assert y.shape == (batch, out_features)
    assert jnp.allclose(y, reference(x, w1, b1, w2, b2), atol=1e-4, rtol=1e-4)

    # 2) Multi-tile rows with a ragged (non-divisible) tail; no batch padding.
    batch2 = 200
    x2 = jax.random.normal(kx2, (batch2, num_feats), jnp.float32)
    y2 = jax.block_until_ready(
        classifier_forward(x2, w1, b1, w2, b2, block_rows=64))
    assert y2.shape == (batch2, out_features)
    assert jnp.allclose(y2, reference(x2, w1, b1, w2, b2), atol=1e-4, rtol=1e-4)

    # 3) Forced K-tiled path (feature-dim grid + f32 hidden accumulator).
    batch3, feats3, hid3 = 64, 384, 96
    x3 = jax.random.normal(kx3, (batch3, feats3), jnp.float32)
    w1b, b1b = init_linear_params(k3, feats3, hid3)
    w2b, b2b = init_linear_params(k2, hid3, out_features)
    y3 = jax.block_until_ready(
        classifier_forward(x3, w1b, b1b, w2b, b2b, block_rows=32, block_k=128))
    assert y3.shape == (batch3, out_features)
    assert jnp.allclose(y3, reference(x3, w1b, b1b, w2b, b2b),
                        atol=1e-4, rtol=1e-4)

    # 4) Optional bf16-compute path (halves x / weight HBM bytes; f32 accum).
    yb = jax.block_until_ready(
        classifier_forward(x2, w1, b1, w2, b2, compute_dtype=jnp.bfloat16))
    assert yb.shape == (batch2, out_features)
    assert jnp.allclose(yb, reference(x2, w1, b1, w2, b2), atol=5e-2, rtol=5e-2)

    print("KERNEL_OK")
</pallas_src>

<mosaic_0001>
module attributes {stable_mosaic.version = 11 : i64} {
  func.func @_mlp_fused_kernel(%arg0: i32, %arg1: memref<8x32xf32, #tpu.memory_space<vmem>>, %arg2: memref<32x128xf32, #tpu.memory_space<vmem>>, %arg3: memref<1x128xf32, #tpu.memory_space<vmem>>, %arg4: memref<128x128xf32, #tpu.memory_space<vmem>>, %arg5: memref<1x128xf32, #tpu.memory_space<vmem>>, %arg6: memref<8x128xf32, #tpu.memory_space<vmem>>) attributes {dimension_semantics = [#tpu.dimension_semantics<parallel>], iteration_bounds = array<i64: 1>, scalar_prefetch = 0 : i64, scratch_operands = 0 : i64, tpu.core_type = #tpu.core_type<tc>, window_params = [{transform_indices = @transform_0, window_bounds = array<i64: 8, 32>}, {pipeline_mode = #tpu.pipeline_mode<synchronous>, transform_indices = @transform_1, window_bounds = array<i64: 32, 128>}, {pipeline_mode = #tpu.pipeline_mode<synchronous>, transform_indices = @transform_2, window_bounds = array<i64: 1, 128>}, {pipeline_mode = #tpu.pipeline_mode<synchronous>, transform_indices = @transform_3, window_bounds = array<i64: 128, 128>}, {pipeline_mode = #tpu.pipeline_mode<synchronous>, transform_indices = @transform_4, window_bounds = array<i64: 1, 128>}, {transform_indices = @transform_5, window_bounds = array<i64: 8, 128>}]} {
    %c0 = arith.constant 0 : index
    %c0_0 = arith.constant 0 : index
    %0 = vector.load %arg1[%c0, %c0_0] : memref<8x32xf32, #tpu.memory_space<vmem>>, vector<8x32xf32>
    %c0_1 = arith.constant 0 : index
    %c0_2 = arith.constant 0 : index
    %1 = vector.load %arg2[%c0_1, %c0_2] : memref<32x128xf32, #tpu.memory_space<vmem>>, vector<32x128xf32>
    %cst = arith.constant dense<0.000000e+00> : vector<8x128xf32>
    %2 = tpu.matmul %0, %1, %cst {dimension_numbers = #tpu.dot_dimension_numbers<[1], [0], [0], [1], [0, 0, 1, 1], [], []>} : vector<8x32xf32>, vector<32x128xf32>, vector<8x128xf32> -> vector<8x128xf32>
    %c0_3 = arith.constant 0 : index
    %c0_4 = arith.constant 0 : index
    %3 = vector.load %arg3[%c0_3, %c0_4] : memref<1x128xf32, #tpu.memory_space<vmem>>, vector<1x128xf32>
    %4 = vector.broadcast %3 : vector<1x128xf32> to vector<8x128xf32>
    %5 = arith.addf %2, %4 : vector<8x128xf32>
    %cst_5 = arith.constant 0.000000e+00 : f32
    %6 = vector.broadcast %cst_5 : f32 to vector<8x128xf32>
    %7 = arith.maximumf %5, %6 : vector<8x128xf32>
    %c0_6 = arith.constant 0 : index
    %c0_7 = arith.constant 0 : index
    %8 = vector.load %arg4[%c0_6, %c0_7] : memref<128x128xf32, #tpu.memory_space<vmem>>, vector<128x128xf32>
    %cst_8 = arith.constant dense<0.000000e+00> : vector<8x128xf32>
    %9 = tpu.matmul %7, %8, %cst_8 {dimension_numbers = #tpu.dot_dimension_numbers<[1], [0], [0], [1], [0, 0, 1, 1], [], []>} : vector<8x128xf32>, vector<128x128xf32>, vector<8x128xf32> -> vector<8x128xf32>
    %c0_9 = arith.constant 0 : index
    %c0_10 = arith.constant 0 : index
    %10 = vector.load %arg5[%c0_9, %c0_10] : memref<1x128xf32, #tpu.memory_space<vmem>>, vector<1x128xf32>
    %11 = vector.broadcast %10 : vector<1x128xf32> to vector<8x128xf32>
    %12 = arith.addf %9, %11 : vector<8x128xf32>
    %c0_11 = arith.constant 0 : index
    %c0_12 = arith.constant 0 : index
    %13 = vector.load %arg6[%c0_11, %c0_12] : memref<8x128xf32, #tpu.memory_space<vmem>>, vector<8x128xf32>
    tpu.vector_store %arg6[%c0_11, %c0_12], %12 {strides = array<i32>} : memref<8x128xf32, #tpu.memory_space<vmem>>, vector<8x128xf32>,
    return
  }
  func.func @transform_0(%arg0: i32) -> (i32, i32) {
    %c0_i32 = arith.constant 0 : i32
    %c0_i32_0 = arith.constant 0 : i32
    return %arg0, %c0_i32 : i32, i32
  }
  func.func @transform_1(%arg0: i32) -> (i32, i32) {
    %c0_i32 = arith.constant 0 : i32
    %c0_i32_0 = arith.constant 0 : i32
    %c0_i32_1 = arith.constant 0 : i32
    return %c0_i32, %c0_i32_0 : i32, i32
  }
  func.func @transform_2(%arg0: i32) -> (i32, i32) {
    %c0_i32 = arith.constant 0 : i32
    %c0_i32_0 = arith.constant 0 : i32
    %c0_i32_1 = arith.constant 0 : i32
    return %c0_i32, %c0_i32_0 : i32, i32
  }
  func.func @transform_3(%arg0: i32) -> (i32, i32) {
    %c0_i32 = arith.constant 0 : i32
    %c0_i32_0 = arith.constant 0 : i32
    %c0_i32_1 = arith.constant 0 : i32
    return %c0_i32, %c0_i32_0 : i32, i32
  }
  func.func @transform_4(%arg0: i32) -> (i32, i32) {
    %c0_i32 = arith.constant 0 : i32
    %c0_i32_0 = arith.constant 0 : i32
    %c0_i32_1 = arith.constant 0 : i32
    return %c0_i32, %c0_i32_0 : i32, i32
  }
  func.func @transform_5(%arg0: i32) -> (i32, i32) {
    %c0_i32 = arith.constant 0 : i32
    %c0_i32_0 = arith.constant 0 : i32
    return %arg0, %c0_i32 : i32, i32
  }
}

</mosaic_0001>

<llo_original>
// kernel: tpu_custom_call.1
$region0: #{tpu_custom_call.1}
  #allocation0 [shape = 'u32[]', space=smem, size = 0x4, offset = 0x4, fixed_abs, tag = 'smem constant byte address 0x4 - core index']
  #allocation1 [shape = 'u32[144,128]{1,0:T(1,128)}', space=vmem, size = 0x12000, scoped, tag = 'internal scratch']
  %s0 = inlined_call_operand.hbm [shape: f32[8,32], index: 0, kind: input, shape index: {}]
  %s1 = inlined_call_operand.hbm [shape: f32[32,128], index: 1, kind: input, shape index: {}]
  %s2 = inlined_call_operand.vmem [shape: f32[1,128], index: 2, kind: input, shape index: {}]
  %s3 = inlined_call_operand.hbm [shape: f32[128,128], index: 3, kind: input, shape index: {}]
  %s4 = inlined_call_operand.vmem [shape: f32[1,128], index: 4, kind: input, shape index: {}]
  %s5 = inlined_call_operand.hbm [shape: f32[8,128], index: 5, kind: output, shape index: {}]
  %s6 = sld [smem:[#allocation0]]
  $region42: #{tpu_custom_call.1} parent=0
    _
  %s8 = ssub.s32 1, %s6
  %s9 = scalar_select 0, %s8, %s6
  $region1: #{tpu_custom_call.1} parent=0
    #allocation2 [shape = 'u8[4096]{0}', space=vmem, size = 0x1000, scoped, tag = 'input window, operand 0, single buffered']
    #allocation3 [shape = 's32[1]{0}', space=sflag, size = 0x4, scoped, tag = 'scoped memory for tpu_custom_call.1']
    #allocation4 [shape = 's32[1]{0}', space=sflag, size = 0x4, scoped, tag = 'scoped memory for tpu_custom_call.1']
    #allocation5 [shape = 'u8[16384]{0}', space=vmem, size = 0x4000, scoped, tag = 'input window, operand 1, single buffered']
    #allocation6 [shape = 's32[1]{0}', space=sflag, size = 0x4, scoped, tag = 'scoped memory for tpu_custom_call.1']
    #allocation7 [shape = 'u8[65536]{0}', space=vmem, size = 0x10000, scoped, tag = 'input window, operand 3, single buffered']
    #allocation8 [shape = 'u8[4096]{0}', space=vmem, size = 0x1000, scoped, tag = 'output window, operand 0, single buffered']
    %10 = vsyncpa [#allocation3], 0
    %11 = vsyncpa [#allocation6], 0
    %12 = vsyncpa [#allocation4], 0
    // Predicated region
    $region2: #{tpu_custom_call.1} parent=1 // pred_check
      _
    $region3: #{tpu_custom_call.1} parent=1 // pred_check_branch
      %14 = sbr.rel (0) target = $region5
    $region4: #{tpu_custom_call.1} parent=1 // pred_region
      %s16 = ssub.s32 128, 128
      %17 = vsyncadd [#allocation3], %s16
      %s19 = sshll.u32 [#allocation2], 4
      %s20 = int_to_ptr.vmem [resolvable:$true] %s19
      %22 = dma.hbm_to_vmem [thread:$0]  %s0, 128, %s20, [#allocation3]
    $region5: #{tpu_custom_call.1} parent=1 // pred_fallthru
      _
    // Predicated region
    $region6: #{tpu_custom_call.1} parent=1 // pred_check
      _
    $region7: #{tpu_custom_call.1} parent=1 // pred_check_branch
      %24 = sbr.rel (0) target = $region9
    $region8: #{tpu_custom_call.1} parent=1 // pred_region
      %s26 = ssub.s32 512, 512
      %27 = vsyncadd [#allocation6], %s26
      %s28 = sshll.u32 [#allocation5], 4
      %s29 = int_to_ptr.vmem [resolvable:$true] %s28
      %34 = dma.hbm_to_vmem [thread:$0]  %s1, 512, %s29, [#allocation6], 128, 128, 8
    $region9: #{tpu_custom_call.1} parent=1 // pred_fallthru
      _
    // Predicated region
    $region10: #{tpu_custom_call.1} parent=1 // pred_check
      _
    $region11: #{tpu_custom_call.1} parent=1 // pred_check_branch
      %36 = sbr.rel (0) target = $region13
    $region12: #{tpu_custom_call.1} parent=1 // pred_region
      _
    $region13: #{tpu_custom_call.1} parent=1 // pred_fallthru
      _
    // Predicated region
    $region14: #{tpu_custom_call.1} parent=1 // pred_check
      _
    $region15: #{tpu_custom_call.1} parent=1 // pred_check_branch
      %38 = sbr.rel (0) target = $region17
    $region16: #{tpu_custom_call.1} parent=1 // pred_region
      %s40 = ssub.s32 2048, 2048
      %41 = vsyncadd [#allocation6], %s40
      %s42 = sshll.u32 [#allocation7], 4
      %s43 = int_to_ptr.vmem [resolvable:$true] %s42
      %48 = dma.hbm_to_vmem [thread:$0]  %s3, 2048, %s43, [#allocation6], 128, 128, 8
    $region17: #{tpu_custom_call.1} parent=1 // pred_fallthru
      _
    // Predicated region
    $region18: #{tpu_custom_call.1} parent=1 // pred_check
      _
    $region19: #{tpu_custom_call.1} parent=1 // pred_check_branch
      %50 = sbr.rel (0) target = $region21
    $region20: #{tpu_custom_call.1} parent=1 // pred_region
      _
    $region21: #{tpu_custom_call.1} parent=1 // pred_fallthru
      _
    // Predicated region
    $region22: #{tpu_custom_call.1} parent=1 // pred_check
      _
    $region23: #{tpu_custom_call.1} parent=1 // pred_check_branch
      %52 = sbr.rel (0) target = $region25
    $region24: #{tpu_custom_call.1} parent=1 // pred_region
      %53 = dma.done [#allocation3], 128
    $region25: #{tpu_custom_call.1} parent=1 // pred_fallthru
      _
    // Predicated region
    $region26: #{tpu_custom_call.1} parent=1 // pred_check
      _
    $region27: #{tpu_custom_call.1} parent=1 // pred_check_branch
      %55 = sbr.rel (0) target = $region29
    $region28: #{tpu_custom_call.1} parent=1 // pred_region
      %56 = dma.done [#allocation6], 512
    $region29: #{tpu_custom_call.1} parent=1 // pred_fallthru
      _
    // Predicated region
    $region30: #{tpu_custom_call.1} parent=1 // pred_check
      _
    $region31: #{tpu_custom_call.1} parent=1 // pred_check_branch
      %58 = sbr.rel (0) target = $region33
    $region32: #{tpu_custom_call.1} parent=1 // pred_region
      %59 = dma.done [#allocation6], 2048
    $region33: #{tpu_custom_call.1} parent=1 // pred_fallthru
      _
    %v60 = vld [vmem:[#allocation2] sm:$0xff]
    %v61 = vld [vmem:[#allocation5] sm:$0xff]
    %v62 = vld [vmem:[#allocation5 + $0x8] sm:$0xff]
    %v63 = vld [vmem:[#allocation5 + $0x10] sm:$0xff]
    %v64 = vld [vmem:[#allocation5 + $0x18] sm:$0xff]
    %v65 = vld [vmem:[%s2] sm:$0x1]
    %v67 = vlaneseq
    %v68 = vshrl.u32 %v67, 7
    %v69 = vsub.s32 0, %v68
    %v70 = vrot.slane %v65, %v69
    %vm72 = vcmask 261120
    %v74 = vsel %vm72, %v60, 0
    %76 = vmatprep.subr.mxu0 0.0
    %77 = vmatpush1.msra.mxu0 0.0
    %78 = vmatprep.subr.mxu0 0.0
    %79 = vmatpush1.msra.mxu0 0.0
    %80 = vmatprep.subr.mxu0 0.0
    %81 = vmatpush1.msra.mxu0 0.0
    %82 = vmatprep.subr.mxu0 0.0
    %83 = vmatpush1.msra.mxu0 0.0
    %84 = vmatprep.subr.mxu0 0.0
    %85 = vmatpush1.msra.mxu0 0.0
    %86 = vmatprep.subr.mxu0 0.0
    %87 = vmatpush1.msra.mxu0 0.0
    %88 = vmatprep.subr.mxu0 0.0
    %89 = vmatpush1.msra.mxu0 0.0
    %90 = vmatprep.subr.mxu0 0.0
    %91 = vmatpush1.msra.mxu0 0.0
    %92 = vmatprep.subr.mxu0 0.0
    %93 = vmatpush1.msra.mxu0 0.0
    %94 = vmatprep.subr.mxu0 0.0
    %95 = vmatpush1.msra.mxu0 0.0
    %96 = vmatprep.subr.mxu0 0.0
    %97 = vmatpush1.msra.mxu0 0.0
    %98 = vmatprep.subr.mxu0 0.0
    %99 = vmatpush1.msra.mxu0 0.0
    %100 = vmatprep.subr.mxu0 0.0
    %101 = vmatpush1.msra.mxu0 %v64
    %102 = vmatprep.subr.mxu0 0.0
    %103 = vmatpush1.msra.mxu0 %v63
    %104 = vmatprep.subr.mxu0 0.0
    %105 = vmatpush1.msra.mxu0 %v62
    %106 = vmatprep.subr.mxu0 0.0
    %107 = vmatpush1.msra.mxu0 %v61
    %108 = vmatprep.subr.mxu0 0.0
    %109 = vmatpush2.msra.mxu0 0.0
    %110 = vmatprep.subr.mxu0 0.0
    %111 = vmatpush2.msra.mxu0 0.0
    %112 = vmatprep.subr.mxu0 0.0
    %113 = vmatpush2.msra.mxu0 0.0
    %114 = vmatprep.subr.mxu0 0.0
    %115 = vmatpush2.msra.mxu0 0.0
    %116 = vmatprep.subr.mxu0 0.0
    %117 = vmatpush2.msra.mxu0 0.0
    %118 = vmatprep.subr.mxu0 0.0
    %119 = vmatpush2.msra.mxu0 0.0
    %120 = vmatprep.subr.mxu0 0.0
    %121 = vmatpush2.msra.mxu0 0.0
    %122 = vmatprep.subr.mxu0 0.0
    %123 = vmatpush2.msra.mxu0 0.0
    %124 = vmatprep.subr.mxu0 0.0
    %125 = vmatpush2.msra.mxu0 0.0
    %126 = vmatprep.subr.mxu0 0.0
    %127 = vmatpush2.msra.mxu0 0.0
    %128 = vmatprep.subr.mxu0 0.0
    %129 = vmatpush2.msra.mxu0 0.0
    %130 = vmatprep.subr.mxu0 0.0
    %131 = vmatpush2.msra.mxu0 0.0
    %132 = vmatprep.subr.mxu0 0.0
    %133 = vmatpush2.msra.mxu0 0.0
    %134 = vmatprep.subr.mxu0 0.0
    %135 = vmatpush2.msra.mxu0 0.0
    %136 = vmatprep.subr.mxu0 0.0
    %137 = vmatpush2.msra.mxu0 0.0
    %138 = vmatprep.subr.mxu0 0.0
    %139 = vmatpush2.msra.mxu0 0.0
    %140 = vmatprep.mubr.f32.mxu0 0.0
    %141 = vmatmul.mubr.f32.gmra.mxu0 %v74
    %v142 = vpop.f32.mrf.mxu0
    %v143 = vadd.f32 %v70, %v142
    %v144 = vpop.f32.mrf.mxu0
    %145 = vdwg.mxu0
    %v146 = vmax.f32 %v143, 0.0
    %v147 = vld [vmem:[#allocation7] sm:$0xff]
    %v148 = vld [vmem:[#allocation7 + $0x8] sm:$0xff]
    %v149 = vld [vmem:[#allocation7 + $0x10] sm:$0xff]
    %v150 = vld [vmem:[#allocation7 + $0x18] sm:$0xff]
    %v151 = vld [vmem:[#allocation7 + $0x20] sm:$0xff]
    %v152 = vld [vmem:[#allocation7 + $0x28] sm:$0xff]
    %v153 = vld [vmem:[#allocation7 + $0x30] sm:$0xff]
    %v154 = vld [vmem:[#allocation7 + $0x38] sm:$0xff]
    %v155 = vld [vmem:[#allocation7 + $0x40] sm:$0xff]
    %v156 = vld [vmem:[#allocation7 + $0x48] sm:$0xff]
    %v157 = vld [vmem:[#allocation7 + $0x50] sm:$0xff]
    %v158 = vld [vmem:[#allocation7 + $0x58] sm:$0xff]
    %v159 = vld [vmem:[#allocation7 + $0x60] sm:$0xff]
    %v160 = vld [vmem:[#allocation7 + $0x68] sm:$0xff]
    %v161 = vld [vmem:[#allocation7 + $0x70] sm:$0xff]
    %v162 = vld [vmem:[#allocation7 + $0x78] sm:$0xff]
    %v163 = vld [vmem:[%s4] sm:$0x1]
    %v165 = vlaneseq
    %v166 = vshrl.u32 %v165, 7
    %v167 = vsub.s32 0, %v166
    %v168 = vrot.slane %v163, %v167
    %170 = vmatprep.subr.mxu0 0.0
    %171 = vmatpush1.msra.mxu0 %v162
    %172 = vmatprep.subr.mxu0 0.0
    %173 = vmatpush1.msra.mxu0 %v161
    %174 = vmatprep.subr.mxu0 0.0
    %175 = vmatpush1.msra.mxu0 %v160
    %176 = vmatprep.subr.mxu0 0.0
    %177 = vmatpush1.msra.mxu0 %v159
    %178 = vmatprep.subr.mxu0 0.0
    %179 = vmatpush1.msra.mxu0 %v158
    %180 = vmatprep.subr.mxu0 0.0
    %181 = vmatpush1.msra.mxu0 %v157
    %182 = vmatprep.subr.mxu0 0.0
    %183 = vmatpush1.msra.mxu0 %v156
    %184 = vmatprep.subr.mxu0 0.0
    %185 = vmatpush1.msra.mxu0 %v155
    %186 = vmatprep.subr.mxu0 0.0
    %187 = vmatpush1.msra.mxu0 %v154
    %188 = vmatprep.subr.mxu0 0.0
    %189 = vmatpush1.msra.mxu0 %v153
    %190 = vmatprep.subr.mxu0 0.0
    %191 = vmatpush1.msra.mxu0 %v152
    %192 = vmatprep.subr.mxu0 0.0
    %193 = vmatpush1.msra.mxu0 %v151
    %194 = vmatprep.subr.mxu0 0.0
    %195 = vmatpush1.msra.mxu0 %v150
    %196 = vmatprep.subr.mxu0 0.0
    %197 = vmatpush1.msra.mxu0 %v149
    %198 = vmatprep.subr.mxu0 0.0
    %199 = vmatpush1.msra.mxu0 %v148
    %200 = vmatprep.subr.mxu0 0.0
    %201 = vmatpush1.msra.mxu0 %v147
    %202 = vmatprep.subr.mxu0 0.0
    %203 = vmatpush2.msra.mxu0 0.0
    %204 = vmatprep.subr.mxu0 0.0
    %205 = vmatpush2.msra.mxu0 0.0
    %206 = vmatprep.subr.mxu0 0.0
    %207 = vmatpush2.msra.mxu0 0.0
    %208 = vmatprep.subr.mxu0 0.0
    %209 = vmatpush2.msra.mxu0 0.0
    %210 = vmatprep.subr.mxu0 0.0
    %211 = vmatpush2.msra.mxu0 0.0
    %212 = vmatprep.subr.mxu0 0.0
    %213 = vmatpush2.msra.mxu0 0.0
    %214 = vmatprep.subr.mxu0 0.0
    %215 = vmatpush2.msra.mxu0 0.0
    %216 = vmatprep.subr.mxu0 0.0
    %217 = vmatpush2.msra.mxu0 0.0
    %218 = vmatprep.subr.mxu0 0.0
    %219 = vmatpush2.msra.mxu0 0.0
    %220 = vmatprep.subr.mxu0 0.0
    %221 = vmatpush2.msra.mxu0 0.0
    %222 = vmatprep.subr.mxu0 0.0
    %223 = vmatpush2.msra.mxu0 0.0
    %224 = vmatprep.subr.mxu0 0.0
    %225 = vmatpush2.msra.mxu0 0.0
    %226 = vmatprep.subr.mxu0 0.0
    %227 = vmatpush2.msra.mxu0 0.0
    %228 = vmatprep.subr.mxu0 0.0
    %229 = vmatpush2.msra.mxu0 0.0
    %230 = vmatprep.subr.mxu0 0.0
    %231 = vmatpush2.msra.mxu0 0.0
    %232 = vmatprep.subr.mxu0 0.0
    %233 = vmatpush2.msra.mxu0 0.0
    %234 = vmatprep.mubr.f32.mxu0 0.0
    %235 = vmatmul.mubr.f32.gmra.mxu0 %v146
    %v236 = vpop.f32.mrf.mxu0
    %v237 = vadd.f32 %v168, %v236
    %v238 = vpop.f32.mrf.mxu0
    %239 = vdwg.mxu0
    %240 = vst [vmem:[#allocation8] sm:$0xff] %v237
    // Predicated region
    $region34: #{tpu_custom_call.1} parent=1 // pred_check
      _
    $region35: #{tpu_custom_call.1} parent=1 // pred_check_branch
      %242 = sbr.rel (0) target = $region37
    $region36: #{tpu_custom_call.1} parent=1 // pred_region
      %s244 = ssub.s32 128, 128
      %245 = vsyncadd [#allocation4], %s244
      %s247 = sshll.u32 [#allocation8], 4
      %s248 = int_to_ptr.vmem [resolvable:$true] %s247
      %250 = dma.vmem_to_hbm [thread:$0]  %s248, 128, %s5, [#allocation4]
    $region37: #{tpu_custom_call.1} parent=1 // pred_fallthru
      _
    // Predicated region
    $region38: #{tpu_custom_call.1} parent=1 // pred_check
      _
    $region39: #{tpu_custom_call.1} parent=1 // pred_check_branch
      %252 = sbr.rel (0) target = $region41
    $region40: #{tpu_custom_call.1} parent=1 // pred_region
      %253 = dma.done [#allocation4], 128
    $region41: #{tpu_custom_call.1} parent=1 // pred_fallthru
      _
    %254 = vsyncpa [#allocation3], 1
    %255 = vsyncpa [#allocation6], 1
    %256 = vsyncpa [#allocation4], 1

</llo_original>
